<compile_context>
chip_gen: v7x
topology: tpu7x:2x2x1
jax: 0.10.0
libtpu: 0.0.40
codegen_flags: <defaults>
</compile_context>

<pallas_src>
import functools

import numpy as np
import jax
import jax.numpy as jnp
from jax import lax
from jax.experimental import pallas as pl
from jax.experimental.pallas import tpu as pltpu


def _make_kernel(H, W, C_IN, INNER, GROWTH):
    HW = H * W

    def kernel(x_ref, s1_ref, b1_ref, w1_ref, b2_ref, w3_ref, m_ref, out_ref):
        # x_ref block: (1, C_IN, HW)  -> channels on sublanes, H*W on lanes.
        x = x_ref[0]                                            # (C_IN, HW)

        # --- BN1 (folded) + ReLU ------------------------------------------
        h = jnp.maximum(x * s1_ref[...] + b1_ref[...], 0.0)     # (C_IN, HW)

        # --- 1x1 conv (BN2 scale folded into w1) + bias2 + ReLU -----------
        y = jnp.dot(w1_ref[...], h,
                    preferred_element_type=jnp.float32)         # (INNER, HW)
        y = jnp.maximum(y + b2_ref[...], 0.0)

        # --- 3x3 conv, padding=1: one stacked matmul over all 9 taps ------
        # t[(ky*3+kx)*G + g, p] = sum_i w3[g, i, ky, kx] * y[i, p]
        t = jnp.dot(w3_ref[...], y,
                    preferred_element_type=jnp.float32)         # (9*G, HW)

        # Combine taps: residual[g, p] = sum_taps mask_tap(p) * t_tap[g, p+s]
        # with s = (ky-1)*W + (kx-1).  pltpu.roll matches jnp.roll semantics
        # (result[p] = x[p - shift]), so shift = (-s) mod HW gives x[p + s].
        acc = t[4 * GROWTH:5 * GROWTH, :]          # center tap (ky=1, kx=1)
        for ky in range(3):
            for kx in range(3):
                if ky == 1 and kx == 1:
                    continue
                k = ky * 3 + kx
                s = (ky - 1) * W + (kx - 1)
                tap = t[k * GROWTH:(k + 1) * GROWTH, :]         # (G, HW)
                shifted = pltpu.roll(tap, (-s) % HW, axis=1)    # XLU rotate
                acc = acc + shifted * m_ref[k]                  # (1,HW) bcast

        # --- single lane-dense store of the residual ----------------------
        out_ref[0] = acc

    return kernel


@functools.partial(jax.jit, static_argnames=("growth_rate",))
def bottleneck_pallas(x_nchw, params, *, growth_rate):
    """x_nchw: (N, C_in, H, W) float32.  Returns (N, C_in+growth, H, W)."""
    N, C_IN, H, W = x_nchw.shape
    HW = H * W
    G = growth_rate
    INNER = 4 * G
    eps = 1e-5

    gamma1, beta1, w1, gamma2, beta2, w3 = params   # torch-layout params

    # Fold BN params (inference mode, running stats = (0, 1)).
    s1 = (gamma1 / jnp.sqrt(1.0 + eps)).reshape(C_IN, 1)
    b1 = beta1.reshape(C_IN, 1)
    s2 = gamma2 / jnp.sqrt(1.0 + eps)
    w1f = w1 * s2[:, None]                          # fold BN2 scale into conv1x1
    b2 = beta2.reshape(INNER, 1)

    # Stack the 9 taps of the 3x3 conv along the matmul M dim:
    # w3 torch layout (G, INNER, 3, 3) -> (9*G, INNER), row (ky*3+kx)*G+g.
    w3s = jnp.transpose(w3, (2, 3, 0, 1)).reshape(9 * G, INNER)

    # Precomputed per-tap validity masks over flattened H*W positions
    # (constant, built host-side -> no in-kernel integer div/mod needed).
    pos = np.arange(HW)
    rr, cc = pos // W, pos % W
    masks_np = np.empty((9, 1, HW), np.float32)
    for ky in range(3):
        for kx in range(3):
            dy, dx = ky - 1, kx - 1
            ok = ((rr + dy >= 0) & (rr + dy < H)
                  & (cc + dx >= 0) & (cc + dx < W))
            masks_np[ky * 3 + kx, 0] = ok.astype(np.float32)
    masks = jnp.asarray(masks_np)

    x_flat = x_nchw.reshape(N, C_IN, HW)            # contiguous reshape, free

    kernel = _make_kernel(H, W, C_IN, INNER, G)

    r_flat = pl.pallas_call(
        kernel,
        out_shape=jax.ShapeDtypeStruct((N, G, HW), jnp.float32),
        grid_spec=pltpu.PrefetchScalarGridSpec(
            num_scalar_prefetch=0,
            grid=(N,),
            in_specs=[
                pl.BlockSpec((1, C_IN, HW), lambda b: (b, 0, 0)),   # x
                pl.BlockSpec((C_IN, 1), lambda b: (0, 0)),          # scale1
                pl.BlockSpec((C_IN, 1), lambda b: (0, 0)),          # bias1
                pl.BlockSpec((INNER, C_IN), lambda b: (0, 0)),      # w1 (BN2-folded)
                pl.BlockSpec((INNER, 1), lambda b: (0, 0)),         # bias2
                pl.BlockSpec((9 * G, INNER), lambda b: (0, 0)),     # w3 stacked
                pl.BlockSpec((9, 1, HW), lambda b: (0, 0, 0)),      # tap masks
            ],
            out_specs=pl.BlockSpec((1, G, HW), lambda b: (b, 0, 0)),
        ),
        compiler_params=pltpu.CompilerParams(
            dimension_semantics=("parallel",)),
    )(x_flat, s1, b1, w1f, b2, w3s, masks)

    # Shortcut concat along the channel axis in NCHW (leading axis, not the
    # lane axis) — x never passes through the kernel.
    r = r_flat.reshape(N, G, H, W)
    return jnp.concatenate([x_nchw, r], axis=1)


def init_params(key, in_channels, growth_rate):
    """Deterministic synthetic parameters in PyTorch layouts."""
    inner = 4 * growth_rate
    ks = jax.random.split(key, 6)

    # BatchNorm2d(in_channels): gamma/beta; running stats = (0, 1).
    gamma1 = jax.random.normal(ks[0], (in_channels,), jnp.float32) * 0.1 + 1.0
    beta1 = jax.random.normal(ks[1], (in_channels,), jnp.float32) * 0.1

    # Conv2d(in_channels, inner, 1, bias=False): weight (inner, in) [== w[:,:,0,0]]
    w1 = jax.random.normal(ks[2], (inner, in_channels), jnp.float32) * 0.1

    # BatchNorm2d(inner)
    gamma2 = jax.random.normal(ks[3], (inner,), jnp.float32) * 0.1 + 1.0
    beta2 = jax.random.normal(ks[4], (inner,), jnp.float32) * 0.1

    # Conv2d(inner, growth, 3, pad=1, bias=False): weight (growth, inner, 3, 3)
    w3 = jax.random.normal(ks[5], (growth_rate, inner, 3, 3), jnp.float32) * 0.05

    return gamma1, beta1, w1, gamma2, beta2, w3


def bottleneck_reference(x_nchw, params, growth_rate):
    """Plain-JAX reference (NCHW, torch weight layouts) for correctness checking."""
    gamma1, beta1, w1, gamma2, beta2, w3 = params
    eps = 1e-5
    s1 = gamma1 / jnp.sqrt(1.0 + eps)
    s2 = gamma2 / jnp.sqrt(1.0 + eps)

    h = jnp.maximum(x_nchw * s1[None, :, None, None]
                    + beta1[None, :, None, None], 0.0)
    y = lax.conv_general_dilated(
        h, w1[:, :, None, None], window_strides=(1, 1), padding='VALID',
        dimension_numbers=('NCHW', 'OIHW', 'NCHW'))
    y = jnp.maximum(y * s2[None, :, None, None]
                    + beta2[None, :, None, None], 0.0)
    r = lax.conv_general_dilated(
        y, w3, window_strides=(1, 1), padding=((1, 1), (1, 1)),
        dimension_numbers=('NCHW', 'OIHW', 'NCHW'))
    return jnp.concatenate([x_nchw, r], axis=1)


if __name__ == "__main__":
    key = jax.random.PRNGKey(0)
    k_x, k_p = jax.random.split(key)

    # Small shapes consistent with the module: batch=2, in_channels=4,
    # spatial=16x16, growth_rate=8  -> output channels = 4 + 8 = 12.
    N, C_IN, H, W = 2, 4, 16, 16
    GROWTH = 8

    x = jax.random.normal(k_x, (N, C_IN, H, W), jnp.float32)
    params = init_params(k_p, C_IN, GROWTH)

    out = bottleneck_pallas(x, params, growth_rate=GROWTH)
    out = jax.block_until_ready(out)

    ref = bottleneck_reference(x, params, GROWTH)
    assert out.shape == (N, C_IN + GROWTH, H, W), out.shape
    assert jnp.allclose(out, ref, rtol=1e-4, atol=1e-4), (
        float(jnp.max(jnp.abs(out - ref))))

    print("KERNEL_OK")
</pallas_src>

<mosaic_0001>
module attributes {stable_mosaic.version = 11 : i64} {
  func.func @kernel(%arg0: i32, %arg1: memref<1x4x256xf32, #tpu.memory_space<vmem>>, %arg2: memref<4x1xf32, #tpu.memory_space<vmem>>, %arg3: memref<4x1xf32, #tpu.memory_space<vmem>>, %arg4: memref<32x4xf32, #tpu.memory_space<vmem>>, %arg5: memref<32x1xf32, #tpu.memory_space<vmem>>, %arg6: memref<72x32xf32, #tpu.memory_space<vmem>>, %arg7: memref<9x1x256xf32, #tpu.memory_space<vmem>>, %arg8: memref<1x8x256xf32, #tpu.memory_space<vmem>>) attributes {dimension_semantics = [#tpu.dimension_semantics<parallel>], iteration_bounds = array<i64: 2>, scalar_prefetch = 0 : i64, scratch_operands = 0 : i64, tpu.core_type = #tpu.core_type<tc>, window_params = [{transform_indices = @transform_0, window_bounds = array<i64: 1, 4, 256>}, {pipeline_mode = #tpu.pipeline_mode<synchronous>, transform_indices = @transform_1, window_bounds = array<i64: 4, 1>}, {pipeline_mode = #tpu.pipeline_mode<synchronous>, transform_indices = @transform_2, window_bounds = array<i64: 4, 1>}, {pipeline_mode = #tpu.pipeline_mode<synchronous>, transform_indices = @transform_3, window_bounds = array<i64: 32, 4>}, {pipeline_mode = #tpu.pipeline_mode<synchronous>, transform_indices = @transform_4, window_bounds = array<i64: 32, 1>}, {pipeline_mode = #tpu.pipeline_mode<synchronous>, transform_indices = @transform_5, window_bounds = array<i64: 72, 32>}, {pipeline_mode = #tpu.pipeline_mode<synchronous>, transform_indices = @transform_6, window_bounds = array<i64: 9, 1, 256>}, {transform_indices = @transform_7, window_bounds = array<i64: 1, 8, 256>}]} {
    %c0 = arith.constant 0 : index
    %c0_0 = arith.constant 0 : index
    %c0_1 = arith.constant 0 : index
    %0 = vector.load %arg1[%c0, %c0_0, %c0_1] : memref<1x4x256xf32, #tpu.memory_space<vmem>>, vector<1x4x256xf32>
    %1 = vector.shape_cast %0 : vector<1x4x256xf32> to vector<4x256xf32>
    %c0_2 = arith.constant 0 : index
    %c0_3 = arith.constant 0 : index
    %2 = vector.load %arg2[%c0_2, %c0_3] : memref<4x1xf32, #tpu.memory_space<vmem>>, vector<4x1xf32>
    %3 = vector.broadcast %2 : vector<4x1xf32> to vector<4x256xf32>
    %4 = arith.mulf %1, %3 : vector<4x256xf32>
    %c0_4 = arith.constant 0 : index
    %c0_5 = arith.constant 0 : index
    %5 = vector.load %arg3[%c0_4, %c0_5] : memref<4x1xf32, #tpu.memory_space<vmem>>, vector<4x1xf32>
    %6 = vector.broadcast %5 : vector<4x1xf32> to vector<4x256xf32>
    %7 = arith.addf %4, %6 : vector<4x256xf32>
    %cst = arith.constant 0.000000e+00 : f32
    %8 = vector.broadcast %cst : f32 to vector<4x256xf32>
    %9 = arith.maximumf %7, %8 : vector<4x256xf32>
    %c0_6 = arith.constant 0 : index
    %c0_7 = arith.constant 0 : index
    %10 = vector.load %arg4[%c0_6, %c0_7] : memref<32x4xf32, #tpu.memory_space<vmem>>, vector<32x4xf32>
    %cst_8 = arith.constant dense<0.000000e+00> : vector<32x256xf32>
    %11 = tpu.matmul %10, %9, %cst_8 {dimension_numbers = #tpu.dot_dimension_numbers<[1], [0], [0], [1], [0, 0, 1, 1], [], []>} : vector<32x4xf32>, vector<4x256xf32>, vector<32x256xf32> -> vector<32x256xf32>
    %c0_9 = arith.constant 0 : index
    %c0_10 = arith.constant 0 : index
    %12 = vector.load %arg5[%c0_9, %c0_10] : memref<32x1xf32, #tpu.memory_space<vmem>>, vector<32x1xf32>
    %13 = vector.broadcast %12 : vector<32x1xf32> to vector<32x256xf32>
    %14 = arith.addf %11, %13 : vector<32x256xf32>
    %cst_11 = arith.constant 0.000000e+00 : f32
    %15 = vector.broadcast %cst_11 : f32 to vector<32x256xf32>
    %16 = arith.maximumf %14, %15 : vector<32x256xf32>
    %c0_12 = arith.constant 0 : index
    %c0_13 = arith.constant 0 : index
    %17 = vector.load %arg6[%c0_12, %c0_13] : memref<72x32xf32, #tpu.memory_space<vmem>>, vector<72x32xf32>
    %cst_14 = arith.constant dense<0.000000e+00> : vector<72x256xf32>
    %18 = tpu.matmul %17, %16, %cst_14 {dimension_numbers = #tpu.dot_dimension_numbers<[1], [0], [0], [1], [0, 0, 1, 1], [], []>} : vector<72x32xf32>, vector<32x256xf32>, vector<72x256xf32> -> vector<72x256xf32>
    %19 = vector.extract_strided_slice %18 {offsets = [32, 0], sizes = [8, 256], strides = [1, 1]} : vector<72x256xf32> to vector<8x256xf32>
    %20 = vector.extract_strided_slice %18 {offsets = [0, 0], sizes = [8, 256], strides = [1, 1]} : vector<72x256xf32> to vector<8x256xf32>
    %c17_i32 = arith.constant 17 : i32
    %21 = tpu.dynamic_rotate %20 by %c17_i32 dim 1 : vector<8x256xf32>, i32 -> vector<8x256xf32>
    %c0_15 = arith.constant 0 : index
    %c0_16 = arith.constant 0 : index
    %c0_17 = arith.constant 0 : index
    %22 = vector.load %arg7[%c0_15, %c0_16, %c0_17] : memref<9x1x256xf32, #tpu.memory_space<vmem>>, vector<1x1x256xf32>
    %23 = vector.shape_cast %22 : vector<1x1x256xf32> to vector<1x256xf32>
    %24 = vector.broadcast %23 : vector<1x256xf32> to vector<8x256xf32>
    %25 = arith.mulf %21, %24 : vector<8x256xf32>
    %26 = arith.addf %19, %25 : vector<8x256xf32>
    %27 = vector.extract_strided_slice %18 {offsets = [8, 0], sizes = [8, 256], strides = [1, 1]} : vector<72x256xf32> to vector<8x256xf32>
    %c16_i32 = arith.constant 16 : i32
    %28 = tpu.dynamic_rotate %27 by %c16_i32 dim 1 : vector<8x256xf32>, i32 -> vector<8x256xf32>
    %c1 = arith.constant 1 : index
    %c0_18 = arith.constant 0 : index
    %c0_19 = arith.constant 0 : index
    %29 = vector.load %arg7[%c1, %c0_18, %c0_19] : memref<9x1x256xf32, #tpu.memory_space<vmem>>, vector<1x1x256xf32>
    %30 = vector.shape_cast %29 : vector<1x1x256xf32> to vector<1x256xf32>
    %31 = vector.broadcast %30 : vector<1x256xf32> to vector<8x256xf32>
    %32 = arith.mulf %28, %31 : vector<8x256xf32>
    %33 = arith.addf %26, %32 : vector<8x256xf32>
    %34 = vector.extract_strided_slice %18 {offsets = [16, 0], sizes = [8, 256], strides = [1, 1]} : vector<72x256xf32> to vector<8x256xf32>
    %c15_i32 = arith.constant 15 : i32
    %35 = tpu.dynamic_rotate %34 by %c15_i32 dim 1 : vector<8x256xf32>, i32 -> vector<8x256xf32>
    %c2 = arith.constant 2 : index
    %c0_20 = arith.constant 0 : index
    %c0_21 = arith.constant 0 : index
    %36 = vector.load %arg7[%c2, %c0_20, %c0_21] : memref<9x1x256xf32, #tpu.memory_space<vmem>>, vector<1x1x256xf32>
    %37 = vector.shape_cast %36 : vector<1x1x256xf32> to vector<1x256xf32>
    %38 = vector.broadcast %37 : vector<1x256xf32> to vector<8x256xf32>
    %39 = arith.mulf %35, %38 : vector<8x256xf32>
    %40 = arith.addf %33, %39 : vector<8x256xf32>
    %41 = vector.extract_strided_slice %18 {offsets = [24, 0], sizes = [8, 256], strides = [1, 1]} : vector<72x256xf32> to vector<8x256xf32>
    %c1_i32 = arith.constant 1 : i32
    %42 = tpu.dynamic_rotate %41 by %c1_i32 dim 1 : vector<8x256xf32>, i32 -> vector<8x256xf32>
    %c3 = arith.constant 3 : index
    %c0_22 = arith.constant 0 : index
    %c0_23 = arith.constant 0 : index
    %43 = vector.load %arg7[%c3, %c0_22, %c0_23] : memref<9x1x256xf32, #tpu.memory_space<vmem>>, vector<1x1x256xf32>
    %44 = vector.shape_cast %43 : vector<1x1x256xf32> to vector<1x256xf32>
    %45 = vector.broadcast %44 : vector<1x256xf32> to vector<8x256xf32>
    %46 = arith.mulf %42, %45 : vector<8x256xf32>
    %47 = arith.addf %40, %46 : vector<8x256xf32>
    %48 = vector.extract_strided_slice %18 {offsets = [40, 0], sizes = [8, 256], strides = [1, 1]} : vector<72x256xf32> to vector<8x256xf32>
    %c255_i32 = arith.constant 255 : i32
    %49 = tpu.dynamic_rotate %48 by %c255_i32 dim 1 : vector<8x256xf32>, i32 -> vector<8x256xf32>
    %c5 = arith.constant 5 : index
    %c0_24 = arith.constant 0 : index
    %c0_25 = arith.constant 0 : index
    %50 = vector.load %arg7[%c5, %c0_24, %c0_25] : memref<9x1x256xf32, #tpu.memory_space<vmem>>, vector<1x1x256xf32>
    %51 = vector.shape_cast %50 : vector<1x1x256xf32> to vector<1x256xf32>
    %52 = vector.broadcast %51 : vector<1x256xf32> to vector<8x256xf32>
    %53 = arith.mulf %49, %52 : vector<8x256xf32>
    %54 = arith.addf %47, %53 : vector<8x256xf32>
    %55 = vector.extract_strided_slice %18 {offsets = [48, 0], sizes = [8, 256], strides = [1, 1]} : vector<72x256xf32> to vector<8x256xf32>
    %c241_i32 = arith.constant 241 : i32
    %56 = tpu.dynamic_rotate %55 by %c241_i32 dim 1 : vector<8x256xf32>, i32 -> vector<8x256xf32>
    %c6 = arith.constant 6 : index
    %c0_26 = arith.constant 0 : index
    %c0_27 = arith.constant 0 : index
    %57 = vector.load %arg7[%c6, %c0_26, %c0_27] : memref<9x1x256xf32, #tpu.memory_space<vmem>>, vector<1x1x256xf32>
    %58 = vector.shape_cast %57 : vector<1x1x256xf32> to vector<1x256xf32>
    %59 = vector.broadcast %58 : vector<1x256xf32> to vector<8x256xf32>
    %60 = arith.mulf %56, %59 : vector<8x256xf32>
    %61 = arith.addf %54, %60 : vector<8x256xf32>
    %62 = vector.extract_strided_slice %18 {offsets = [56, 0], sizes = [8, 256], strides = [1, 1]} : vector<72x256xf32> to vector<8x256xf32>
    %c240_i32 = arith.constant 240 : i32
    %63 = tpu.dynamic_rotate %62 by %c240_i32 dim 1 : vector<8x256xf32>, i32 -> vector<8x256xf32>
    %c7 = arith.constant 7 : index
    %c0_28 = arith.constant 0 : index
    %c0_29 = arith.constant 0 : index
    %64 = vector.load %arg7[%c7, %c0_28, %c0_29] : memref<9x1x256xf32, #tpu.memory_space<vmem>>, vector<1x1x256xf32>
    %65 = vector.shape_cast %64 : vector<1x1x256xf32> to vector<1x256xf32>
    %66 = vector.broadcast %65 : vector<1x256xf32> to vector<8x256xf32>
    %67 = arith.mulf %63, %66 : vector<8x256xf32>
    %68 = arith.addf %61, %67 : vector<8x256xf32>
    %69 = vector.extract_strided_slice %18 {offsets = [64, 0], sizes = [8, 256], strides = [1, 1]} : vector<72x256xf32> to vector<8x256xf32>
    %c239_i32 = arith.constant 239 : i32
    %70 = tpu.dynamic_rotate %69 by %c239_i32 dim 1 : vector<8x256xf32>, i32 -> vector<8x256xf32>
    %c8 = arith.constant 8 : index
    %c0_30 = arith.constant 0 : index
    %c0_31 = arith.constant 0 : index
    %71 = vector.load %arg7[%c8, %c0_30, %c0_31] : memref<9x1x256xf32, #tpu.memory_space<vmem>>, vector<1x1x256xf32>
    %72 = vector.shape_cast %71 : vector<1x1x256xf32> to vector<1x256xf32>
    %73 = vector.broadcast %72 : vector<1x256xf32> to vector<8x256xf32>
    %74 = arith.mulf %70, %73 : vector<8x256xf32>
    %75 = arith.addf %68, %74 : vector<8x256xf32>
    %c0_32 = arith.constant 0 : index
    %c0_33 = arith.constant 0 : index
    %c0_34 = arith.constant 0 : index
    %76 = vector.load %arg8[%c0_32, %c0_33, %c0_34] : memref<1x8x256xf32, #tpu.memory_space<vmem>>, vector<1x8x256xf32>
    %77 = vector.shape_cast %76 : vector<1x8x256xf32> to vector<8x256xf32>
    %78 = vector.shape_cast %75 : vector<8x256xf32> to vector<1x8x256xf32>
    tpu.vector_store %arg8[%c0_32, %c0_33, %c0_34], %78 {strides = array<i32>} : memref<1x8x256xf32, #tpu.memory_space<vmem>>, vector<1x8x256xf32>,
    return
  }
  func.func @transform_0(%arg0: i32) -> (i32, i32, i32) {
    %c0_i32 = arith.constant 0 : i32
    %c0_i32_0 = arith.constant 0 : i32
    %c0_i32_1 = arith.constant 0 : i32
    return %arg0, %c0_i32, %c0_i32_0 : i32, i32, i32
  }
  func.func @transform_1(%arg0: i32) -> (i32, i32) {
    %c0_i32 = arith.constant 0 : i32
    %c0_i32_0 = arith.constant 0 : i32
    %c0_i32_1 = arith.constant 0 : i32
    return %c0_i32, %c0_i32_0 : i32, i32
  }
  func.func @transform_2(%arg0: i32) -> (i32, i32) {
    %c0_i32 = arith.constant 0 : i32
    %c0_i32_0 = arith.constant 0 : i32
    %c0_i32_1 = arith.constant 0 : i32
    return %c0_i32, %c0_i32_0 : i32, i32
  }
  func.func @transform_3(%arg0: i32) -> (i32, i32) {
    %c0_i32 = arith.constant 0 : i32
    %c0_i32_0 = arith.constant 0 : i32
    %c0_i32_1 = arith.constant 0 : i32
    return %c0_i32, %c0_i32_0 : i32, i32
  }
  func.func @transform_4(%arg0: i32) -> (i32, i32) {
    %c0_i32 = arith.constant 0 : i32
    %c0_i32_0 = arith.constant 0 : i32
    %c0_i32_1 = arith.constant 0 : i32
    return %c0_i32, %c0_i32_0 : i32, i32
  }
  func.func @transform_5(%arg0: i32) -> (i32, i32) {
    %c0_i32 = arith.constant 0 : i32
    %c0_i32_0 = arith.constant 0 : i32
    %c0_i32_1 = arith.constant 0 : i32
    return %c0_i32, %c0_i32_0 : i32, i32
  }
  func.func @transform_6(%arg0: i32) -> (i32, i32, i32) {
    %c0_i32 = arith.constant 0 : i32
    %c0_i32_0 = arith.constant 0 : i32
    %c0_i32_1 = arith.constant 0 : i32
    %c0_i32_2 = arith.constant 0 : i32
    return %c0_i32, %c0_i32_0, %c0_i32_1 : i32, i32, i32
  }
  func.func @transform_7(%arg0: i32) -> (i32, i32, i32) {
    %c0_i32 = arith.constant 0 : i32
    %c0_i32_0 = arith.constant 0 : i32
    %c0_i32_1 = arith.constant 0 : i32
    return %arg0, %c0_i32, %c0_i32_0 : i32, i32, i32
  }
}

</mosaic_0001>

<llo_original>
// kernel: bottleneck_pallas.1
$region0: #{bottleneck_pallas.1}
  #allocation0 [shape = 'u32[]', space=smem, size = 0x4, offset = 0x4, fixed_abs, tag = 'smem constant byte address 0x4 - core index']
  #allocation1 [shape = 'u32[144,128]{1,0:T(1,128)}', space=vmem, size = 0x12000, scoped, tag = 'internal scratch']
  %s0 = inlined_call_operand.vmem [shape: f32[2,4,256], index: 0, kind: input, shape index: {}]
  %s1 = inlined_call_operand.vmem [shape: f32[4,1], index: 1, kind: input, shape index: {}]
  %s2 = inlined_call_operand.vmem [shape: f32[4,1], index: 2, kind: input, shape index: {}]
  %s3 = inlined_call_operand.vmem [shape: f32[32,4], index: 3, kind: input, shape index: {}]
  %s4 = inlined_call_operand.vmem [shape: f32[32,1], index: 4, kind: input, shape index: {}]
  %s5 = inlined_call_operand.vmem [shape: f32[72,32], index: 5, kind: input, shape index: {}]
  %s6 = inlined_call_operand.vmem [shape: f32[9,1,256], index: 6, kind: input, shape index: {}]
  %s7 = inlined_call_operand.vmem [shape: f32[2,8,256], index: 7, kind: output, shape index: {}]
  %s8 = sld [smem:[#allocation0]]
  $region61: #{bottleneck_pallas.1} parent=0
    _
  %s10 = ssub.s32 1, %s8
  %s11 = scalar_select 0, %s10, %s8
  loop: start=0, step=1, limit=4
  $region2: #{bottleneck_pallas.1} parent=0 // loop_pre_header
    _
  $region3: #{bottleneck_pallas.1} parent=0 // loop_header
    %s13 = sphi 0, %s17
    %p14 = scmp.ge.s32.totalorder %s13, 4
    %s23 = sphi 0, %s25
    %s26 = sphi 0, %s23
    %s27 = sphi 0, %s26
    %s43 = sphi 0, %s27
    %s47 = sphi 0, %s47
    %s49 = sphi 0, %s47
    %s50 = sphi 0, %s49
    %s64 = sphi 0, %s50
    %s68 = sphi 0, %s68
    %s70 = sphi 0, %s68
    %s71 = sphi 0, %s70
    %s85 = sphi 0, %s71
    %s89 = sphi 0, %s89
    %s91 = sphi 0, %s89
    %s92 = sphi 0, %s91
    %s106 = sphi 0, %s92
    %s110 = sphi 0, %s110
    %s112 = sphi 0, %s110
    %s113 = sphi 0, %s112
    %s127 = sphi 0, %s113
    %s131 = sphi 0, %s131
    %s133 = sphi 0, %s131
    %s134 = sphi 0, %s133
    %s148 = sphi 0, %s134
    %s152 = sphi 0, %s152
    %s154 = sphi 0, %s152
    %s155 = sphi 0, %s154
    %s169 = sphi 0, %s155
    %s175 = sphi 0, %s177
    %s178 = sphi 0, %s175
    %s179 = sphi 0, %s178
    %s195 = sphi 0, %s179
  $region4: #{bottleneck_pallas.1} parent=0 // loop_header_branch
    %16 = sbr.rel (%p14) target = $region8
  $region5: #{bottleneck_pallas.1} parent=0 // loop_body
    %s18 = ssub.s32 %s13, 1
    %s19 = ssub.s32 %s13, 2
    %s20 = sadd.s32 %s13, 1
    %s21 = ssub.s32 %s13, %s20
    %p22 = scmp.eq.s32.totalorder %s21, 0
    %s24 = sadd.s32 %s23, 1
    %s25 = scalar_select %p22, %s23, %s24
    %p28 = pneg %p22
    %p29 = scmp.eq.s32.totalorder %s13, 1
    %p30 = por %p28, %p29
    %p31 = scmp.ne.s32.totalorder %s23, %s26
    %p32 = scmp.eq.s32.totalorder %s13, 0
    %p33 = por %p31, %p32
    %p34 = scmp.ne.s32.totalorder %s23, %s26
    %p35 = scmp.eq.s32.totalorder %s18, 1
    %p36 = por %p34, %p35
    %p37 = scmp.ne.s32.totalorder %s26, %s27
    %p38 = scmp.eq.s32.totalorder %s18, 0
    %p39 = por %p37, %p38
    %p40 = scmp.ne.s32.totalorder %s26, %s27
    %p41 = scmp.eq.s32.totalorder %s19, 1
    %p42 = por %p40, %p41
    %p44 = scmp.ne.s32.totalorder %s27, %s43
    %p45 = scmp.eq.s32.totalorder %s19, 0
    %p46 = por %p44, %p45
    %s48 = sadd.s32 %s47, 1
    %p51 = scmp.eq.s32.totalorder %s13, 1
    %p52 = scmp.ne.s32.totalorder %s47, %s49
    %p53 = scmp.eq.s32.totalorder %s13, 0
    %p54 = por %p52, %p53
    %p55 = scmp.ne.s32.totalorder %s47, %s49
    %p56 = scmp.eq.s32.totalorder %s18, 1
    %p57 = por %p55, %p56
    %p58 = scmp.ne.s32.totalorder %s49, %s50
    %p59 = scmp.eq.s32.totalorder %s18, 0
    %p60 = por %p58, %p59
    %p61 = scmp.ne.s32.totalorder %s49, %s50
    %p62 = scmp.eq.s32.totalorder %s19, 1
    %p63 = por %p61, %p62
    %p65 = scmp.ne.s32.totalorder %s50, %s64
    %p66 = scmp.eq.s32.totalorder %s19, 0
    %p67 = por %p65, %p66
    %s69 = sadd.s32 %s68, 1
    %p72 = scmp.eq.s32.totalorder %s13, 1
    %p73 = scmp.ne.s32.totalorder %s68, %s70
    %p74 = scmp.eq.s32.totalorder %s13, 0
    %p75 = por %p73, %p74
    %p76 = scmp.ne.s32.totalorder %s68, %s70
    %p77 = scmp.eq.s32.totalorder %s18, 1
    %p78 = por %p76, %p77
    %p79 = scmp.ne.s32.totalorder %s70, %s71
    %p80 = scmp.eq.s32.totalorder %s18, 0
    %p81 = por %p79, %p80
    %p82 = scmp.ne.s32.totalorder %s70, %s71
    %p83 = scmp.eq.s32.totalorder %s19, 1
    %p84 = por %p82, %p83
    %p86 = scmp.ne.s32.totalorder %s71, %s85
    %p87 = scmp.eq.s32.totalorder %s19, 0
    %p88 = por %p86, %p87
    %s90 = sadd.s32 %s89, 1
    %p93 = scmp.eq.s32.totalorder %s13, 1
    %p94 = scmp.ne.s32.totalorder %s89, %s91
    %p95 = scmp.eq.s32.totalorder %s13, 0
    %p96 = por %p94, %p95
    %p97 = scmp.ne.s32.totalorder %s89, %s91
    %p98 = scmp.eq.s32.totalorder %s18, 1
    %p99 = por %p97, %p98
    %p100 = scmp.ne.s32.totalorder %s91, %s92
    %p101 = scmp.eq.s32.totalorder %s18, 0
    %p102 = por %p100, %p101
    %p103 = scmp.ne.s32.totalorder %s91, %s92
    %p104 = scmp.eq.s32.totalorder %s19, 1
    %p105 = por %p103, %p104
    %p107 = scmp.ne.s32.totalorder %s92, %s106
    %p108 = scmp.eq.s32.totalorder %s19, 0
    %p109 = por %p107, %p108
    %s111 = sadd.s32 %s110, 1
    %p114 = scmp.eq.s32.totalorder %s13, 1
    %p115 = scmp.ne.s32.totalorder %s110, %s112
    %p116 = scmp.eq.s32.totalorder %s13, 0
    %p117 = por %p115, %p116
    %p118 = scmp.ne.s32.totalorder %s110, %s112
    %p119 = scmp.eq.s32.totalorder %s18, 1
    %p120 = por %p118, %p119
    %p121 = scmp.ne.s32.totalorder %s112, %s113
    %p122 = scmp.eq.s32.totalorder %s18, 0
    %p123 = por %p121, %p122
    %p124 = scmp.ne.s32.totalorder %s112, %s113
    %p125 = scmp.eq.s32.totalorder %s19, 1
    %p126 = por %p124, %p125
    %p128 = scmp.ne.s32.totalorder %s113, %s127
    %p129 = scmp.eq.s32.totalorder %s19, 0
    %p130 = por %p128, %p129
    %s132 = sadd.s32 %s131, 1
    %p135 = scmp.eq.s32.totalorder %s13, 1
    %p136 = scmp.ne.s32.totalorder %s131, %s133
    %p137 = scmp.eq.s32.totalorder %s13, 0
    %p138 = por %p136, %p137
    %p139 = scmp.ne.s32.totalorder %s131, %s133
    %p140 = scmp.eq.s32.totalorder %s18, 1
    %p141 = por %p139, %p140
    %p142 = scmp.ne.s32.totalorder %s133, %s134
    %p143 = scmp.eq.s32.totalorder %s18, 0
    %p144 = por %p142, %p143
    %p145 = scmp.ne.s32.totalorder %s133, %s134
    %p146 = scmp.eq.s32.totalorder %s19, 1
    %p147 = por %p145, %p146
    %p149 = scmp.ne.s32.totalorder %s134, %s148
    %p150 = scmp.eq.s32.totalorder %s19, 0
    %p151 = por %p149, %p150
    %s153 = sadd.s32 %s152, 1
    %p156 = scmp.eq.s32.totalorder %s13, 1
    %p157 = scmp.ne.s32.totalorder %s152, %s154
    %p158 = scmp.eq.s32.totalorder %s13, 0
    %p159 = por %p157, %p158
    %p160 = scmp.ne.s32.totalorder %s152, %s154
    %p161 = scmp.eq.s32.totalorder %s18, 1
    %p162 = por %p160, %p161
    %p163 = scmp.ne.s32.totalorder %s154, %s155
    %p164 = scmp.eq.s32.totalorder %s18, 0
    %p165 = por %p163, %p164
    %p166 = scmp.ne.s32.totalorder %s154, %s155
    %p167 = scmp.eq.s32.totalorder %s19, 1
    %p168 = por %p166, %p167
    %p170 = scmp.ne.s32.totalorder %s155, %s169
    %p171 = scmp.eq.s32.totalorder %s19, 0
    %p172 = por %p170, %p171
    %s173 = ssub.s32 %s13, %s20
    %p174 = scmp.eq.s32.totalorder %s173, 0
    %s176 = sadd.s32 %s175, 1
    %s177 = scalar_select %p174, %s175, %s176
    %p180 = pneg %p174
    %p181 = scmp.eq.s32.totalorder %s13, 1
    %p182 = por %p180, %p181
    %p183 = scmp.ne.s32.totalorder %s175, %s178
    %p184 = scmp.eq.s32.totalorder %s13, 0
    %p185 = por %p183, %p184
    %p186 = scmp.ne.s32.totalorder %s175, %s178
    %p187 = scmp.eq.s32.totalorder %s18, 1
    %p188 = por %p186, %p187
    %p189 = scmp.ne.s32.totalorder %s178, %s179
    %p190 = scmp.eq.s32.totalorder %s18, 0
    %p191 = por %p189, %p190
    %p192 = scmp.ne.s32.totalorder %s178, %s179
    %p193 = scmp.eq.s32.totalorder %s19, 1
    %p194 = por %p192, %p193
    %p196 = scmp.ne.s32.totalorder %s179, %s195
    %p197 = scmp.eq.s32.totalorder %s19, 0
    %p198 = por %p196, %p197
    %p199 = scmp.le.s32.totalorder 1, %s13
    %p200 = scmp.lt.s32.totalorder %s13, 3
    %p201 = pnand %p199, %p200
    %p202 = pneg %p201
    // Predicated region
    $region9: #{bottleneck_pallas.1} parent=5 // pred_check
      _
    $region10: #{bottleneck_pallas.1} parent=5 // pred_check_branch
      %204 = sbr.rel (%p201) target = $region12
    $region11: #{bottleneck_pallas.1} parent=5 // pred_region
      %s205 = ssub.s32 %s13, 1
      // Predicated region
      $region13: #{bottleneck_pallas.1} parent=11 // pred_check
        %p206 = pneg %p60
      $region14: #{bottleneck_pallas.1} parent=11 // pred_check_branch
        %208 = sbr.rel (%p206) target = $region16
      $region15: #{bottleneck_pallas.1} parent=11 // pred_region
        _
      $region16: #{bottleneck_pallas.1} parent=11 // pred_fallthru
        _
      // Predicated region
      $region17: #{bottleneck_pallas.1} parent=11 // pred_check
        %p209 = pneg %p81
      $region18: #{bottleneck_pallas.1} parent=11 // pred_check_branch
        %211 = sbr.rel (%p209) target = $region20
      $region19: #{bottleneck_pallas.1} parent=11 // pred_region
        _
      $region20: #{bottleneck_pallas.1} parent=11 // pred_fallthru
        _
      // Predicated region
      $region21: #{bottleneck_pallas.1} parent=11 // pred_check
        %p212 = pneg %p102
      $region22: #{bottleneck_pallas.1} parent=11 // pred_check_branch
        %214 = sbr.rel (%p212) target = $region24
      $region23: #{bottleneck_pallas.1} parent=11 // pred_region
        _
      $region24: #{bottleneck_pallas.1} parent=11 // pred_fallthru
        _
      // Predicated region
      $region25: #{bottleneck_pallas.1} parent=11 // pred_check
        %p215 = pneg %p123
      $region26: #{bottleneck_pallas.1} parent=11 // pred_check_branch
        %217 = sbr.rel (%p215) target = $region28
      $region27: #{bottleneck_pallas.1} parent=11 // pred_region
        _
      $region28: #{bottleneck_pallas.1} parent=11 // pred_fallthru
        _
      // Predicated region
      $region29: #{bottleneck_pallas.1} parent=11 // pred_check
        %p218 = pneg %p144
      $region30: #{bottleneck_pallas.1} parent=11 // pred_check_branch
        %220 = sbr.rel (%p218) target = $region32
      $region31: #{bottleneck_pallas.1} parent=11 // pred_region
        _
      $region32: #{bottleneck_pallas.1} parent=11 // pred_fallthru
        _
      // Predicated region
      $region33: #{bottleneck_pallas.1} parent=11 // pred_check
        %p221 = pneg %p165
      $region34: #{bottleneck_pallas.1} parent=11 // pred_check_branch
        %223 = sbr.rel (%p221) target = $region36
      $region35: #{bottleneck_pallas.1} parent=11 // pred_region
        _
      $region36: #{bottleneck_pallas.1} parent=11 // pred_fallthru
        _
    $region12: #{bottleneck_pallas.1} parent=5 // pred_fallthru
      _
    %p224 = scmp.lt.s32.totalorder %s13, 2
    // Predicated region
    $region37: #{bottleneck_pallas.1} parent=5 // pred_check
      %p225 = pneg %p224
    $region38: #{bottleneck_pallas.1} parent=5 // pred_check_branch
      %227 = sbr.rel (%p225) target = $region40
    $region39: #{bottleneck_pallas.1} parent=5 // pred_region
      // Predicated region
      $region41: #{bottleneck_pallas.1} parent=39 // pred_check
        %p228 = pneg %p33
      $region42: #{bottleneck_pallas.1} parent=39 // pred_check_branch
        %230 = sbr.rel (%p228) target = $region44
      $region43: #{bottleneck_pallas.1} parent=39 // pred_region
        %p231 = scmp.lt.s32.totalorder %s13, 1
        %s232 = scalar_select %p231, %s13, 1
        %s233 = smul.addr %s232, 2
        %s234 = smul.addr %s233, 4
        %s235 = scalar_lea.vmem %s0, %s234
      $region44: #{bottleneck_pallas.1} parent=39 // pred_fallthru
        _
    $region40: #{bottleneck_pallas.1} parent=5 // pred_fallthru
      _
    %p236 = scmp.le.s32.totalorder 1, %s13
    %p237 = scmp.lt.s32.totalorder %s13, 3
    %p238 = pnand %p236, %p237
    %p239 = pneg %p238
    // Predicated region
    $region45: #{bottleneck_pallas.1} parent=5 // pred_check
      _
    $region46: #{bottleneck_pallas.1} parent=5 // pred_check_branch
      %241 = sbr.rel (%p238) target = $region48
    $region47: #{bottleneck_pallas.1} parent=5 // pred_region
      %s242 = ssub.s32 %s13, 1
      %p243 = scmp.lt.s32.totalorder %s18, 1
      %s244 = scalar_select %p243, %s18, 1
      %s245 = smul.addr %s244, 2
      %s246 = smul.addr %s245, 4
      %s247 = scalar_lea.vmem %s0, %s246
      %p248 = pneg %p39
      %p249 = pneg %p36
      %p250 = pneg %p60
      %p251 = pneg %p57
      %p252 = pneg %p81
      %p253 = pneg %p78
      %p254 = pneg %p102
      %p255 = pneg %p99
      %p256 = pneg %p123
      %p257 = pneg %p120
      %p258 = pneg %p144
      %p259 = pneg %p141
      %p260 = pneg %p165
      %p261 = pneg %p162
      %p262 = pneg %p191
      %p263 = pneg %p188
      %p264 = scmp.lt.s32.totalorder %s18, 1
      %s265 = scalar_select %p264, %s18, 1
      %s266 = smul.addr %s265, 2
      %s267 = smul.addr %s266, 8
      %s268 = scalar_lea.vmem %s7, %s267
      %p269 = scmp.lt.s32.totalorder %s18, 1
      %s270 = scalar_select %p269, %s18, 1
      %s271 = smul.addr %s270, 2
      %s272 = smul.addr %s271, 4
      %s273 = scalar_lea.vmem %s0, %s272
      %p274 = scmp.lt.s32.totalorder %s18, 1
      %s275 = scalar_select %p274, %s18, 1
      %s276 = smul.addr %s275, 2
      %s277 = smul.addr %s276, 8
      %s278 = scalar_lea.vmem %s7, %s277
      %v279 = vld [vmem:[%s273] sm:$0xff]
      %v280 = vld [vmem:[%s1] sm:$0xf]
      %282 = vset.pattern.permute.xlu0 0
      %283 = vperm.xlu0 %282, %v280
      %v284 = vpop.permute.xlu0 %283
      %v286 = vunpack.c.l.s4 839922192
      %v287 = vunpack.c.0.s8 %v286
      %v288 = vlaneseq
      %v289 = vshrl.u32 %v288, 7
      %v290 = vsub.s32 %v287, %v289
      %v291 = vrot.slane %v284, %v290
      %v293 = vmul.f32 %v279, %v291
      %v294 = vld [vmem:[%s2] sm:$0xf]
      %296 = vset.pattern.permute.xlu0 0
      %297 = vperm.xlu0 %296, %v294
      %v298 = vpop.permute.xlu0 %297
      %v300 = vunpack.c.l.s4 839922192
      %v301 = vunpack.c.0.s8 %v300
      %v302 = vlaneseq
      %v303 = vshrl.u32 %v302, 7
      %v304 = vsub.s32 %v301, %v303
      %v305 = vrot.slane %v298, %v304
      %v307 = vadd.f32 %v293, %v305
      %v308 = vmax.f32 %v307, 0.0
      %v309 = vld [vmem:[%s3] sm:$0xff]
      %v310 = vld [vmem:[%s3 + $0x8] sm:$0xff]
      %v311 = vld [vmem:[%s3 + $0x10] sm:$0xff]
      %v312 = vld [vmem:[%s3 + $0x18] sm:$0xff]
      %v313 = vld [vmem:[%s4] sm:$0xff]
      %v314 = vld [vmem:[%s4 + $0x8] sm:$0xff]
      %v315 = vld [vmem:[%s4 + $0x10] sm:$0xff]
      %v316 = vld [vmem:[%s4 + $0x18] sm:$0xff]
      %318 = vset.pattern.permute.xlu0 0
      %319 = vperm.xlu0 %318, %v313
      %v320 = vpop.permute.xlu0 %319
      %323 = vset.pattern.permute.xlu0 0
      %324 = vperm.xlu0 %323, %v314
      %v325 = vpop.permute.xlu0 %324
      %328 = vset.pattern.permute.xlu0 0
      %329 = vperm.xlu0 %328, %v315
      %v330 = vpop.permute.xlu0 %329
      %333 = vset.pattern.permute.xlu0 0
      %334 = vperm.xlu0 %333, %v316
      %v335 = vpop.permute.xlu0 %334
      %v338 = vcombine.high %v308, %v308
      %vm339 = vcmask 31744
      %v341 = vsel %vm339, %v309, 0
      %v344 = vsel %vm339, %v310, 0
      %v347 = vsel %vm339, %v311, 0
      %v350 = vsel %vm339, %v312, 0
      %vm352 = vcmask 1043456
      %v353 = vsel %vm352, %v308, 0
      %v355 = vsel %vm352, %v338, 0
      %357 = vmatprep.subr.mxu0 %v355
      %358 = vmatpush1.msra.mxu0 %v353
      %359 = vmatprep.subr.mxu0 0.0
      %360 = vmatpush1.msra.mxu0 0.0
      %361 = vmatprep.subr.mxu0 0.0
      %362 = vmatpush1.msra.mxu0 0.0
      %363 = vmatprep.subr.mxu0 0.0
      %364 = vmatpush1.msra.mxu0 0.0
      %365 = vmatprep.subr.mxu0 0.0
      %366 = vmatpush1.msra.mxu0 0.0
      %367 = vmatprep.subr.mxu0 0.0
      %368 = vmatpush1.msra.mxu0 0.0
      %369 = vmatprep.subr.mxu0 0.0
      %370 = vmatpush1.msra.mxu0 0.0
      %371 = vmatprep.subr.mxu0 0.0
      %372 = vmatpush1.msra.mxu0 0.0
      %373 = vmatprep.subr.mxu0 0.0
      %374 = vmatpush1.msra.mxu0 0.0
      %375 = vmatprep.subr.mxu0 0.0
      %376 = vmatpush1.msra.mxu0 0.0
      %377 = vmatprep.subr.mxu0 0.0
      %378 = vmatpush1.msra.mxu0 0.0
      %379 = vmatprep.subr.mxu0 0.0
      %380 = vmatpush1.msra.mxu0 0.0
      %381 = vmatprep.subr.mxu0 0.0
      %382 = vmatpush1.msra.mxu0 0.0
      %383 = vmatprep.subr.mxu0 0.0
      %384 = vmatpush1.msra.mxu0 0.0
      %385 = vmatprep.subr.mxu0 0.0
      %386 = vmatpush1.msra.mxu0 0.0
      %387 = vmatprep.subr.mxu0 0.0
      %388 = vmatpush1.msra.mxu0 0.0
      %389 = vmatprep.subr.mxu0 0.0
      %390 = vmatpush1.msra.mxu0 0.0
      %391 = vmatprep.subr.mxu0 0.0
      %392 = vmatpush1.msra.mxu0 0.0
      %393 = vmatprep.subr.mxu0 0.0
      %394 = vmatpush1.msra.mxu0 0.0
      %395 = vmatprep.subr.mxu0 0.0
      %396 = vmatpush1.msra.mxu0 0.0
      %397 = vmatprep.subr.mxu0 0.0
      %398 = vmatpush1.msra.mxu0 0.0
      %399 = vmatprep.subr.mxu0 0.0
      %400 = vmatpush1.msra.mxu0 0.0
      %401 = vmatprep.subr.mxu0 0.0
      %402 = vmatpush1.msra.mxu0 0.0
      %403 = vmatprep.subr.mxu0 0.0
      %404 = vmatpush1.msra.mxu0 0.0
      %405 = vmatprep.subr.mxu0 0.0
      %406 = vmatpush1.msra.mxu0 0.0
      %407 = vmatprep.subr.mxu0 0.0
      %408 = vmatpush1.msra.mxu0 0.0
      %409 = vmatprep.subr.mxu0 0.0
      %410 = vmatpush1.msra.mxu0 0.0
      %411 = vmatprep.subr.mxu0 0.0
      %412 = vmatpush1.msra.mxu0 0.0
      %413 = vmatprep.subr.mxu0 0.0
      %414 = vmatpush1.msra.mxu0 0.0
      %415 = vmatprep.subr.mxu0 0.0
      %416 = vmatpush1.msra.mxu0 0.0
      %417 = vmatprep.subr.mxu0 0.0
      %418 = vmatpush1.msra.mxu0 0.0
      %419 = vmatprep.subr.mxu0 0.0
      %420 = vmatpush1.msra.mxu0 0.0
      %421 = vmatprep.mubr.f32.mxu0 0.0
      %422 = vmatmul.mubr.f32.gmra.mrb[0].mxu0 %v341
      %v423 = vpop.f32.mrb[0].mxu0
      %v424 = vadd.f32 %v320, %v423
      %v425 = vpop.f32.mrb[0].mxu0
      %v426 = vadd.f32 %v320, %v425
      %427 = vmatprep.mubr.f32.mxu0 0.0
      %428 = vmatmul.mubr.f32.gmra.mrb[0].mxu0 %v344
      %v429 = vpop.f32.mrb[0].mxu0
      %v430 = vadd.f32 %v325, %v429
      %v431 = vpop.f32.mrb[0].mxu0
      %v432 = vadd.f32 %v325, %v431
      %433 = vmatprep.mubr.f32.mxu0 0.0
      %434 = vmatmul.mubr.f32.gmra.mrb[0].mxu0 %v347
      %v435 = vpop.f32.mrb[0].mxu0
      %v436 = vadd.f32 %v330, %v435
      %v437 = vpop.f32.mrb[0].mxu0
      %v438 = vadd.f32 %v330, %v437
      %439 = vmatprep.mubr.f32.mxu0 0.0
      %440 = vmatmul.mubr.f32.gmra.mrb[0].mxu0 %v350
      %v441 = vpop.f32.mrb[0].mxu0
      %v442 = vadd.f32 %v335, %v441
      %v443 = vpop.f32.mrb[0].mxu0
      %v444 = vadd.f32 %v335, %v443
      %445 = vdwg.mxu0
      %v446 = vmax.f32 %v424, 0.0
      %v447 = vmax.f32 %v426, 0.0
      %v448 = vmax.f32 %v430, 0.0
      %v449 = vmax.f32 %v432, 0.0
      %v450 = vmax.f32 %v436, 0.0
      %v451 = vmax.f32 %v438, 0.0
      %v452 = vmax.f32 %v442, 0.0
      %v453 = vmax.f32 %v444, 0.0
      %v454 = vld [vmem:[%s5] sm:$0xff]
      %v455 = vld [vmem:[%s5 + $0x8] sm:$0xff]
      %v456 = vld [vmem:[%s5 + $0x10] sm:$0xff]
      %v457 = vld [vmem:[%s5 + $0x18] sm:$0xff]
      %v458 = vld [vmem:[%s5 + $0x20] sm:$0xff]
      %v459 = vld [vmem:[%s5 + $0x28] sm:$0xff]
      %v460 = vld [vmem:[%s5 + $0x30] sm:$0xff]
      %v461 = vld [vmem:[%s5 + $0x38] sm:$0xff]
      %v462 = vld [vmem:[%s5 + $0x40] sm:$0xff]
      %vm463 = vcmask 261120
      %v465 = vsel %vm463, %v454, 0
      %v468 = vsel %vm463, %v455, 0
      %v471 = vsel %vm463, %v456, 0
      %v474 = vsel %vm463, %v457, 0
      %v477 = vsel %vm463, %v458, 0
      %v480 = vsel %vm463, %v459, 0
      %v483 = vsel %vm463, %v460, 0
      %v486 = vsel %vm463, %v461, 0
      %v489 = vsel %vm463, %v462, 0
      %491 = vmatprep.subr.mxu0 %v447
      %492 = vmatpush1.msra.mxu0 %v446
      %493 = vmatprep.subr.mxu0 %v449
      %494 = vmatpush1.msra.mxu0 %v448
      %495 = vmatprep.subr.mxu0 %v451
      %496 = vmatpush1.msra.mxu0 %v450
      %497 = vmatprep.subr.mxu0 %v453
      %498 = vmatpush1.msra.mxu0 %v452
      %499 = vmatprep.subr.mxu0 0.0
      %500 = vmatpush1.msra.mxu0 0.0
      %501 = vmatprep.subr.mxu0 0.0
      %502 = vmatpush1.msra.mxu0 0.0
      %503 = vmatprep.subr.mxu0 0.0
      %504 = vmatpush1.msra.mxu0 0.0
      %505 = vmatprep.subr.mxu0 0.0
      %506 = vmatpush1.msra.mxu0 0.0
      %507 = vmatprep.subr.mxu0 0.0
      %508 = vmatpush1.msra.mxu0 0.0
      %509 = vmatprep.subr.mxu0 0.0
      %510 = vmatpush1.msra.mxu0 0.0
      %511 = vmatprep.subr.mxu0 0.0
      %512 = vmatpush1.msra.mxu0 0.0
      %513 = vmatprep.subr.mxu0 0.0
      %514 = vmatpush1.msra.mxu0 0.0
      %515 = vmatprep.subr.mxu0 0.0
      %516 = vmatpush1.msra.mxu0 0.0
      %517 = vmatprep.subr.mxu0 0.0
      %518 = vmatpush1.msra.mxu0 0.0
      %519 = vmatprep.subr.mxu0 0.0
      %520 = vmatpush1.msra.mxu0 0.0
      %521 = vmatprep.subr.mxu0 0.0
      %522 = vmatpush1.msra.mxu0 0.0
      %523 = vmatprep.subr.mxu0 0.0
      %524 = vmatpush1.msra.mxu0 0.0
      %525 = vmatprep.subr.mxu0 0.0
      %526 = vmatpush1.msra.mxu0 0.0
      %527 = vmatprep.subr.mxu0 0.0
      %528 = vmatpush1.msra.mxu0 0.0
      %529 = vmatprep.subr.mxu0 0.0
      %530 = vmatpush1.msra.mxu0 0.0
      %531 = vmatprep.subr.mxu0 0.0
      %532 = vmatpush1.msra.mxu0 0.0
      %533 = vmatprep.subr.mxu0 0.0
      %534 = vmatpush1.msra.mxu0 0.0
      %535 = vmatprep.subr.mxu0 0.0
      %536 = vmatpush1.msra.mxu0 0.0
      %537 = vmatprep.subr.mxu0 0.0
      %538 = vmatpush1.msra.mxu0 0.0
      %539 = vmatprep.subr.mxu0 0.0
      %540 = vmatpush1.msra.mxu0 0.0
      %541 = vmatprep.subr.mxu0 0.0
      %542 = vmatpush1.msra.mxu0 0.0
      %543 = vmatprep.subr.mxu0 0.0
      %544 = vmatpush1.msra.mxu0 0.0
      %545 = vmatprep.subr.mxu0 0.0
      %546 = vmatpush1.msra.mxu0 0.0
      %547 = vmatprep.subr.mxu0 0.0
      %548 = vmatpush1.msra.mxu0 0.0
      %549 = vmatprep.subr.mxu0 0.0
      %550 = vmatpush1.msra.mxu0 0.0
      %551 = vmatprep.subr.mxu0 0.0
      %552 = vmatpush1.msra.mxu0 0.0
      %553 = vmatprep.subr.mxu0 0.0
      %554 = vmatpush1.msra.mxu0 0.0
      %555 = vmatprep.mubr.f32.mxu0 0.0
      %556 = vmatmul.mubr.f32.gmra.mrb[0].mxu0 %v465
      %v557 = vpop.f32.mrb[0].mxu0
      %v558 = vadd.f32 0.0, %v557
      %v559 = vpop.f32.mrb[0].mxu0
      %v560 = vadd.f32 0.0, %v559
      %561 = vmatprep.mubr.f32.mxu0 0.0
      %562 = vmatmul.mubr.f32.gmra.mrb[0].mxu0 %v468
      %v563 = vpop.f32.mrb[0].mxu0
      %v564 = vadd.f32 0.0, %v563
      %v565 = vpop.f32.mrb[0].mxu0
      %v566 = vadd.f32 0.0, %v565
      %567 = vmatprep.mubr.f32.mxu0 0.0
      %568 = vmatmul.mubr.f32.gmra.mrb[0].mxu0 %v471
      %v569 = vpop.f32.mrb[0].mxu0
      %v570 = vadd.f32 0.0, %v569
      %v571 = vpop.f32.mrb[0].mxu0
      %v572 = vadd.f32 0.0, %v571
      %573 = vmatprep.mubr.f32.mxu0 0.0
      %574 = vmatmul.mubr.f32.gmra.mrb[0].mxu0 %v474
      %v575 = vpop.f32.mrb[0].mxu0
      %v576 = vadd.f32 0.0, %v575
      %v577 = vpop.f32.mrb[0].mxu0
      %v578 = vadd.f32 0.0, %v577
      %579 = vmatprep.mubr.f32.mxu0 0.0
      %580 = vmatmul.mubr.f32.gmra.mrb[0].mxu0 %v477
      %v581 = vpop.f32.mrb[0].mxu0
      %v582 = vadd.f32 0.0, %v581
      %v583 = vpop.f32.mrb[0].mxu0
      %v584 = vadd.f32 0.0, %v583
      %585 = vmatprep.mubr.f32.mxu0 0.0
      %586 = vmatmul.mubr.f32.gmra.mrb[0].mxu0 %v480
      %v587 = vpop.f32.mrb[0].mxu0
      %v588 = vadd.f32 0.0, %v587
      %v589 = vpop.f32.mrb[0].mxu0
      %v590 = vadd.f32 0.0, %v589
      %591 = vmatprep.mubr.f32.mxu0 0.0
      %592 = vmatmul.mubr.f32.gmra.mrb[0].mxu0 %v483
      %v593 = vpop.f32.mrb[0].mxu0
      %v594 = vadd.f32 0.0, %v593
      %v595 = vpop.f32.mrb[0].mxu0
      %v596 = vadd.f32 0.0, %v595
      %597 = vmatprep.mubr.f32.mxu0 0.0
      %598 = vmatmul.mubr.f32.gmra.mrb[0].mxu0 %v486
      %v599 = vpop.f32.mrb[0].mxu0
      %v600 = vadd.f32 0.0, %v599
      %v601 = vpop.f32.mrb[0].mxu0
      %v602 = vadd.f32 0.0, %v601
      %603 = vmatprep.mubr.f32.mxu0 0.0
      %604 = vmatmul.mubr.f32.gmra.mrb[0].mxu0 %v489
      %v605 = vpop.f32.mrb[0].mxu0
      %v606 = vadd.f32 0.0, %v605
      %v607 = vpop.f32.mrb[0].mxu0
      %v608 = vadd.f32 0.0, %v607
      %609 = vdwg.mxu0
      %610 = vrot.lane.b32.xlu0 %v558, 17
      %v611 = vpop.permute.xlu0 %610
      %612 = vrot.lane.b32.xlu0 %v560, 17
      %v613 = vpop.permute.xlu0 %612
      %v614 = vlaneseq
      %v615 = vand.u32 %v614, 127
      %vm616 = vcmp.lt.s32.totalorder %v615, 17
      %v617 = vsel %vm616, %v611, %v613
      %v618 = vsel %vm616, %v613, %v611
      %v619 = vld [vmem:[%s6] sm:$0x3]
      %v621 = vlaneseq
      %v622 = vshrl.u32 %v621, 7
      %v623 = vsub.s32 0, %v622
      %v624 = vrot.slane %v619, %v623
      %v625 = vlaneseq
      %v626 = vshrl.u32 %v625, 7
      %v627 = vsub.s32 1, %v626
      %v628 = vrot.slane %v619, %v627
      %v631 = vmul.f32 %v618, %v624
      %v632 = vmul.f32 %v617, %v628
      %v633 = vadd.f32 %v582, %v631
      %v634 = vadd.f32 %v584, %v632
      %635 = vrot.lane.b32.xlu0 %v564, 16
      %v636 = vpop.permute.xlu0 %635
      %637 = vrot.lane.b32.xlu0 %v566, 16
      %v638 = vpop.permute.xlu0 %637
      %vm639 = vcmp.lt.s32.totalorder %v615, 16
      %v640 = vsel %vm639, %v636, %v638
      %v641 = vsel %vm639, %v638, %v636
      %s642 = scalar_lea.vmem %s6, 2
      %v643 = vld [vmem:[%s642] sm:$0x3]
      %v645 = vlaneseq
      %v646 = vshrl.u32 %v645, 7
      %v647 = vsub.s32 0, %v646
      %v648 = vrot.slane %v643, %v647
      %v649 = vlaneseq
      %v650 = vshrl.u32 %v649, 7
      %v651 = vsub.s32 1, %v650
      %v652 = vrot.slane %v643, %v651
      %v655 = vmul.f32 %v641, %v648
      %v656 = vmul.f32 %v640, %v652
      %v657 = vadd.f32 %v633, %v655
      %v658 = vadd.f32 %v634, %v656
      %659 = vrot.lane.b32.xlu0 %v570, 15
      %v660 = vpop.permute.xlu0 %659
      %661 = vrot.lane.b32.xlu0 %v572, 15
      %v662 = vpop.permute.xlu0 %661
      %vm663 = vcmp.lt.s32.totalorder %v615, 15
      %v664 = vsel %vm663, %v660, %v662
      %v665 = vsel %vm663, %v662, %v660
      %s666 = scalar_lea.vmem %s6, 4
      %v667 = vld [vmem:[%s666] sm:$0x3]
      %v669 = vlaneseq
      %v670 = vshrl.u32 %v669, 7
      %v671 = vsub.s32 0, %v670
      %v672 = vrot.slane %v667, %v671
      %v673 = vlaneseq
      %v674 = vshrl.u32 %v673, 7
      %v675 = vsub.s32 1, %v674
      %v676 = vrot.slane %v667, %v675
      %v679 = vmul.f32 %v665, %v672
      %v680 = vmul.f32 %v664, %v676
      %v681 = vadd.f32 %v657, %v679
      %v682 = vadd.f32 %v658, %v680
      %683 = vrot.lane.b32.xlu0 %v576, 1
      %v684 = vpop.permute.xlu0 %683
      %685 = vrot.lane.b32.xlu0 %v578, 1
      %v686 = vpop.permute.xlu0 %685
      %vm687 = vcmp.lt.s32.totalorder %v615, 1
      %v688 = vsel %vm687, %v684, %v686
      %v689 = vsel %vm687, %v686, %v684
      %s690 = scalar_lea.vmem %s6, 6
      %v691 = vld [vmem:[%s690] sm:$0x3]
      %v693 = vlaneseq
      %v694 = vshrl.u32 %v693, 7
      %v695 = vsub.s32 0, %v694
      %v696 = vrot.slane %v691, %v695
      %v697 = vlaneseq
      %v698 = vshrl.u32 %v697, 7
      %v699 = vsub.s32 1, %v698
      %v700 = vrot.slane %v691, %v699
      %v703 = vmul.f32 %v689, %v696
      %v704 = vmul.f32 %v688, %v700
      %v705 = vadd.f32 %v681, %v703
      %v706 = vadd.f32 %v682, %v704
      %707 = vrot.lane.b32.xlu0 %v588, 127
      %v708 = vpop.permute.xlu0 %707
      %709 = vrot.lane.b32.xlu0 %v590, 127
      %v710 = vpop.permute.xlu0 %709
      %vm711 = vcmp.lt.s32.totalorder %v615, 127
      %v712 = vsel %vm711, %v708, %v710
      %v713 = vsel %vm711, %v710, %v708
      %s714 = scalar_lea.vmem %s6, 10
      %v715 = vld [vmem:[%s714] sm:$0x3]
      %v717 = vlaneseq
      %v718 = vshrl.u32 %v717, 7
      %v719 = vsub.s32 0, %v718
      %v720 = vrot.slane %v715, %v719
      %v721 = vlaneseq
      %v722 = vshrl.u32 %v721, 7
      %v723 = vsub.s32 1, %v722
      %v724 = vrot.slane %v715, %v723
      %v727 = vmul.f32 %v712, %v720
      %v728 = vmul.f32 %v713, %v724
      %v729 = vadd.f32 %v705, %v727
      %v730 = vadd.f32 %v706, %v728
      %731 = vrot.lane.b32.xlu0 %v594, 113
      %v732 = vpop.permute.xlu0 %731
      %733 = vrot.lane.b32.xlu0 %v596, 113
      %v734 = vpop.permute.xlu0 %733
      %vm735 = vcmp.lt.s32.totalorder %v615, 113
      %v736 = vsel %vm735, %v732, %v734
      %v737 = vsel %vm735, %v734, %v732
      %s738 = scalar_lea.vmem %s6, 12
      %v739 = vld [vmem:[%s738] sm:$0x3]
      %v741 = vlaneseq
      %v742 = vshrl.u32 %v741, 7
      %v743 = vsub.s32 0, %v742
      %v744 = vrot.slane %v739, %v743
      %v745 = vlaneseq
      %v746 = vshrl.u32 %v745, 7
      %v747 = vsub.s32 1, %v746
      %v748 = vrot.slane %v739, %v747
      %v751 = vmul.f32 %v736, %v744
      %v752 = vmul.f32 %v737, %v748
      %v753 = vadd.f32 %v729, %v751
      %v754 = vadd.f32 %v730, %v752
      %755 = vrot.lane.b32.xlu0 %v600, 112
      %v756 = vpop.permute.xlu0 %755
      %757 = vrot.lane.b32.xlu0 %v602, 112
      %v758 = vpop.permute.xlu0 %757
      %vm759 = vcmp.lt.s32.totalorder %v615, 112
      %v760 = vsel %vm759, %v756, %v758
      %v761 = vsel %vm759, %v758, %v756
      %s762 = scalar_lea.vmem %s6, 14
      %v763 = vld [vmem:[%s762] sm:$0x3]
      %v765 = vlaneseq
      %v766 = vshrl.u32 %v765, 7
      %v767 = vsub.s32 0, %v766
      %v768 = vrot.slane %v763, %v767
      %v769 = vlaneseq
      %v770 = vshrl.u32 %v769, 7
      %v771 = vsub.s32 1, %v770
      %v772 = vrot.slane %v763, %v771
      %v775 = vmul.f32 %v760, %v768
      %v776 = vmul.f32 %v761, %v772
      %v777 = vadd.f32 %v753, %v775
      %v778 = vadd.f32 %v754, %v776
      %779 = vrot.lane.b32.xlu0 %v606, 111
      %v780 = vpop.permute.xlu0 %779
      %781 = vrot.lane.b32.xlu0 %v608, 111
      %v782 = vpop.permute.xlu0 %781
      %vm783 = vcmp.lt.s32.totalorder %v615, 111
      %v784 = vsel %vm783, %v780, %v782
      %v785 = vsel %vm783, %v782, %v780
      %s786 = scalar_lea.vmem %s6, 16
      %v787 = vld [vmem:[%s786] sm:$0x3]
      %v789 = vlaneseq
      %v790 = vshrl.u32 %v789, 7
      %v791 = vsub.s32 0, %v790
      %v792 = vrot.slane %v787, %v791
      %v793 = vlaneseq
      %v794 = vshrl.u32 %v793, 7
      %v795 = vsub.s32 1, %v794
      %v796 = vrot.slane %v787, %v795
      %v799 = vmul.f32 %v784, %v792
      %v800 = vmul.f32 %v785, %v796
      %v801 = vadd.f32 %v777, %v799
      %v802 = vadd.f32 %v778, %v800
      %803 = vst [vmem:[%s278] sm:$0xff] %v801
      %804 = vst [vmem:[%s278 + $0x8] sm:$0xff] %v802
      %p805 = scmp.lt.s32.totalorder %s18, 1
      %s806 = scalar_select %p805, %s18, 1
      %s807 = smul.addr %s806, 2
      %s808 = smul.addr %s807, 8
      %s809 = scalar_lea.vmem %s7, %s808
      // Predicated region
      $region49: #{bottleneck_pallas.1} parent=47 // pred_check
        %p810 = pneg %p188
      $region50: #{bottleneck_pallas.1} parent=47 // pred_check_branch
        %812 = sbr.rel (%p810) target = $region52
      $region51: #{bottleneck_pallas.1} parent=47 // pred_region
        _
      $region52: #{bottleneck_pallas.1} parent=47 // pred_fallthru
        _
    $region48: #{bottleneck_pallas.1} parent=5 // pred_fallthru
      _
    %p813 = scmp.le.s32.totalorder 2, %s13
    // Predicated region
    $region53: #{bottleneck_pallas.1} parent=5 // pred_check
      %p814 = pneg %p813
    $region54: #{bottleneck_pallas.1} parent=5 // pred_check_branch
      %816 = sbr.rel (%p814) target = $region56
    $region55: #{bottleneck_pallas.1} parent=5 // pred_region
      %s817 = ssub.s32 %s13, 2
      // Predicated region
      $region57: #{bottleneck_pallas.1} parent=55 // pred_check
        %p818 = pneg %p194
      $region58: #{bottleneck_pallas.1} parent=55 // pred_check_branch
        %820 = sbr.rel (%p818) target = $region60
      $region59: #{bottleneck_pallas.1} parent=55 // pred_region
        %p821 = scmp.lt.s32.totalorder %s19, 1
        %s822 = scalar_select %p821, %s19, 1
        %s823 = smul.addr %s822, 2
        %s824 = smul.addr %s823, 8
        %s825 = scalar_lea.vmem %s7, %s824
      $region60: #{bottleneck_pallas.1} parent=55 // pred_fallthru
        _
    $region56: #{bottleneck_pallas.1} parent=5 // pred_fallthru
      _
  $region6: #{bottleneck_pallas.1} parent=0 // loop_footer
    %s17 = sadd.s32 1, %s13
  $region7: #{bottleneck_pallas.1} parent=0 // loop_footer_branch
    %12 = sbr.rel target = $region3
  $region8: #{bottleneck_pallas.1} parent=0 // loop_exit
    _

</llo_original>
